<compile_context>
chip_gen: v7x
topology: tpu7x:2x2x1
jax: 0.10.0
libtpu: 0.0.40
codegen_flags: <defaults>
</compile_context>

<pallas_src>
import math
import jax
import jax.numpy as jnp
from jax.experimental import pallas as pl
from jax.experimental.pallas import tpu as pltpu

H1, H2, H3 = 4, 2, 1    # layer widths of CarsModel
LANES = 128             # TPU lane width


def _round_up(n, m):
    return ((n + m - 1) // m) * m


def _pick_chunk(n_sub):
    """Sub-block height (sublane rows) for the in-kernel chunk loop."""
    for c in (16, 8):
        if n_sub % c == 0:
            return c
    return n_sub            # small single tile: process in one shot


def _make_kernel(d_in, n_sub, chunk):
    # Offsets into the packed flat parameter vector (weights stored (in, out) row-major).
    OW1 = 0
    OB1 = OW1 + d_in * H1
    OW2 = OB1 + H1
    OB2 = OW2 + H1 * H2
    OW3 = OB2 + H2
    OB3 = OW3 + H2 * H3
    n_chunks = n_sub // chunk

    def sigmoid(z):
        # exp goes to the EUP slot; exact divide keeps 1e-5 agreement with the reference.
        return pl.reciprocal(1.0 + jnp.exp(-z), approx=False)

    def kernel(p_ref, x_ref, o_ref):
        # p_ref: (n_params,) f32 SMEM (resident across the whole grid).
        # x_ref: (d_in, n_sub, 128) f32 VMEM — batch dense on (sublane, lane).
        # o_ref: (n_sub, 128) f32 VMEM — sublane/lane-dense output tile.
        def process(r, rows):
            # Load the d_in feature rows for this (rows x 128) batch sub-block only.
            xc = [x_ref[k, pl.ds(r, rows), :] for k in range(d_in)]

            # Layer 1: d_in -> 4, sigmoid.  Bias folded into the first FMA term.
            h1 = []
            for j in range(H1):
                acc = p_ref[OB1 + j] + p_ref[OW1 + j] * xc[0]
                for k in range(1, d_in):
                    acc = acc + p_ref[OW1 + k * H1 + j] * xc[k]
                h1.append(sigmoid(acc))

            # Layer 2: 4 -> 2, sigmoid.
            h2 = []
            for j in range(H2):
                acc = p_ref[OB2 + j] + p_ref[OW2 + j] * h1[0]
                for k in range(1, H1):
                    acc = acc + p_ref[OW2 + k * H2 + j] * h1[k]
                h2.append(sigmoid(acc))

            # Layer 3: 2 -> 1, linear.
            out = p_ref[OB3] + p_ref[OW3 + 0] * h2[0] + p_ref[OW3 + 1] * h2[1]
            o_ref[pl.ds(r, rows), :] = out.astype(o_ref.dtype)

        if n_chunks == 1:
            process(0, n_sub)
        else:
            def body(c, carry):
                process(pl.multiple_of(c * chunk, chunk), chunk)
                return carry
            jax.lax.fori_loop(0, n_chunks, body, 0, unroll=2)

    return kernel


def pack_params(params):
    """Flatten (w1, b1, w2, b2, w3, b3) into one f32 vector.

    Weights MUST be stored (in_features, out_features) — i.e. the TRANSPOSE of
    torch.nn.Linear.weight, which is (out, in)."""
    w1, b1, w2, b2, w3, b3 = params
    assert w1.ndim == 2 and w1.shape[1] == H1 and b1.shape == (H1,)
    assert w2.shape == (H1, H2) and b2.shape == (H2,)
    assert w3.shape == (H2, H3) and b3.shape == (H3,)
    return jnp.concatenate([p.reshape(-1).astype(jnp.float32) for p in params])


def _choose_tiling(B, tb):
    bp128 = _round_up(max(B, 1), LANES)
    if tb is None:
        if bp128 <= 2048:
            tb = bp128                                            # one small tile
        else:
            # >= 2 tiles so both v7x TensorCores get work; cap at 32K lanes per tile.
            tb = min(32768, _round_up((bp128 + 1) // 2, 1024))
    tb = _round_up(tb, LANES)
    bp = _round_up(bp128, tb)
    if bp != tb and tb % 1024 != 0:
        # Multi-tile blocks need a sublane dim that is a multiple of 8.
        tb = _round_up(tb, 1024)
        bp = _round_up(bp128, tb)
    return tb, bp


def cars_model_forward(x, params, *, tb=None, feature_major=False):
    """Forward pass matching CarsModel: x (B, n_inputs) -> (B, 1) f32.

    With feature_major=True, x is accepted as (n_inputs, B), letting the caller skip the
    wrapper-side transpose (saves one full read+write of x in HBM at large B)."""
    if feature_major:
        D, B = x.shape
        xT = x.astype(jnp.float32)
    else:
        B, D = x.shape
        # Ideally this transpose is fused into / supplied by the producer; for this
        # memory-bound kernel it is the only remaining avoidable HBM traffic.
        xT = x.T.astype(jnp.float32)

    tb, Bp = _choose_tiling(B, tb)
    n_tiles = Bp // tb
    s_tile = tb // LANES            # sublane-groups per tile
    n_sub_total = Bp // LANES

    # Batch dense on (sublane-group, lane); pad batch to a whole number of tiles.
    xt = jnp.pad(xT, ((0, 0), (0, Bp - B))).reshape(D, n_sub_total, LANES)
    p = pack_params(params)

    chunk = _pick_chunk(s_tile)
    cost = pl.CostEstimate(
        flops=2 * Bp * (D * H1 + H1 * H2 + H2 * H3),
        transcendentals=(H1 + H2) * Bp,
        bytes_accessed=Bp * (D + 1) * 4 + int(p.size) * 4)

    out = pl.pallas_call(
        _make_kernel(D, s_tile, chunk),
        out_shape=jax.ShapeDtypeStruct((n_sub_total, LANES), jnp.float32),
        grid=(n_tiles,),
        in_specs=[
            pl.BlockSpec(memory_space=pltpu.MemorySpace.SMEM),        # packed params
            pl.BlockSpec((D, s_tile, LANES), lambda i: (0, i, 0)),    # x tile
        ],
        out_specs=pl.BlockSpec((s_tile, LANES), lambda i: (i, 0)),    # dense output tile
        compiler_params=pltpu.CompilerParams(
            dimension_semantics=("parallel",)),                       # split tiles on v7x
        cost_estimate=cost,
    )(p, xt)

    return out.reshape(Bp)[:B].reshape(B, 1)


def init_params(key, n_inputs):
    """Match the torch module's init:
       weights: xavier_uniform_  (bound = sqrt(6/(fan_in+fan_out)))
       biases:  nn.Linear default uniform(-1/sqrt(fan_in), 1/sqrt(fan_in))
       Weights are stored transposed, i.e. (in_features, out_features)."""
    dims = [(n_inputs, H1), (H1, H2), (H2, H3)]
    keys = jax.random.split(key, 2 * len(dims))
    params = []
    for i, (fan_in, fan_out) in enumerate(dims):
        wb = math.sqrt(6.0 / (fan_in + fan_out))
        w = jax.random.uniform(keys[2 * i], (fan_in, fan_out),
                               minval=-wb, maxval=wb, dtype=jnp.float32)
        bb = 1.0 / math.sqrt(fan_in)
        b = jax.random.uniform(keys[2 * i + 1], (fan_out,),
                               minval=-bb, maxval=bb, dtype=jnp.float32)
        params.extend([w, b])
    return tuple(params)


def reference_forward(x, params):
    w1, b1, w2, b2, w3, b3 = params
    hi = jax.lax.Precision.HIGHEST
    h1 = jax.nn.sigmoid(jnp.dot(x, w1, precision=hi) + b1)
    h2 = jax.nn.sigmoid(jnp.dot(h1, w2, precision=hi) + b2)
    return jnp.dot(h2, w3, precision=hi) + b3


if __name__ == "__main__":
    key = jax.random.PRNGKey(0)
    k_x1, k_x2, k_p = jax.random.split(key, 3)

    n_inputs = 8
    params = init_params(k_p, n_inputs)

    # Tiny batch: single 128-lane tile, single in-kernel chunk.
    x_small = jax.random.normal(k_x1, (8, n_inputs), dtype=jnp.float32)
    out_small = jax.block_until_ready(cars_model_forward(x_small, params))
    ref_small = reference_forward(x_small, params)
    assert out_small.shape == (8, 1)
    assert jnp.allclose(out_small, ref_small, atol=1e-5, rtol=1e-5)

    # Larger, non-multiple-of-128 batch: exercises padding, the multi-tile "parallel"
    # grid (2 tiles) and the in-kernel chunk loop (2 chunks per tile).
    x_big = jax.random.normal(k_x2, (5000, n_inputs), dtype=jnp.float32)
    out_big = jax.block_until_ready(cars_model_forward(x_big, params, tb=4096))
    ref_big = reference_forward(x_big, params)
    assert out_big.shape == (5000, 1)
    assert jnp.allclose(out_big, ref_big, atol=1e-5, rtol=1e-5)

    print("KERNEL_OK")
</pallas_src>

<mosaic_0001>
module attributes {stable_mosaic.version = 11 : i64} {
  func.func @kernel(%arg0: i32, %arg1: memref<49xf32, #tpu.memory_space<smem>>, %arg2: memref<8x1x128xf32, #tpu.memory_space<vmem>>, %arg3: memref<1x128xf32, #tpu.memory_space<vmem>>) attributes {dimension_semantics = [#tpu.dimension_semantics<parallel>], iteration_bounds = array<i64: 1>, scalar_prefetch = 0 : i64, scratch_operands = 0 : i64, tpu.core_type = #tpu.core_type<tc>, window_params = [{transform_indices = @transform_0, window_bounds = array<i64: 49>}, {transform_indices = @transform_1, window_bounds = array<i64: 8, 1, 128>}, {transform_indices = @transform_2, window_bounds = array<i64: 1, 128>}]} {
    %c0 = arith.constant 0 : index
    %c0_0 = arith.constant 0 : index
    %c0_1 = arith.constant 0 : index
    %0 = vector.load %arg2[%c0, %c0_0, %c0_1] : memref<8x1x128xf32, #tpu.memory_space<vmem>>, vector<1x1x128xf32>
    %1 = vector.shape_cast %0 : vector<1x1x128xf32> to vector<1x128xf32>
    %c1 = arith.constant 1 : index
    %c0_2 = arith.constant 0 : index
    %c0_3 = arith.constant 0 : index
    %2 = vector.load %arg2[%c1, %c0_2, %c0_3] : memref<8x1x128xf32, #tpu.memory_space<vmem>>, vector<1x1x128xf32>
    %3 = vector.shape_cast %2 : vector<1x1x128xf32> to vector<1x128xf32>
    %c2 = arith.constant 2 : index
    %c0_4 = arith.constant 0 : index
    %c0_5 = arith.constant 0 : index
    %4 = vector.load %arg2[%c2, %c0_4, %c0_5] : memref<8x1x128xf32, #tpu.memory_space<vmem>>, vector<1x1x128xf32>
    %5 = vector.shape_cast %4 : vector<1x1x128xf32> to vector<1x128xf32>
    %c3 = arith.constant 3 : index
    %c0_6 = arith.constant 0 : index
    %c0_7 = arith.constant 0 : index
    %6 = vector.load %arg2[%c3, %c0_6, %c0_7] : memref<8x1x128xf32, #tpu.memory_space<vmem>>, vector<1x1x128xf32>
    %7 = vector.shape_cast %6 : vector<1x1x128xf32> to vector<1x128xf32>
    %c4 = arith.constant 4 : index
    %c0_8 = arith.constant 0 : index
    %c0_9 = arith.constant 0 : index
    %8 = vector.load %arg2[%c4, %c0_8, %c0_9] : memref<8x1x128xf32, #tpu.memory_space<vmem>>, vector<1x1x128xf32>
    %9 = vector.shape_cast %8 : vector<1x1x128xf32> to vector<1x128xf32>
    %c5 = arith.constant 5 : index
    %c0_10 = arith.constant 0 : index
    %c0_11 = arith.constant 0 : index
    %10 = vector.load %arg2[%c5, %c0_10, %c0_11] : memref<8x1x128xf32, #tpu.memory_space<vmem>>, vector<1x1x128xf32>
    %11 = vector.shape_cast %10 : vector<1x1x128xf32> to vector<1x128xf32>
    %c6 = arith.constant 6 : index
    %c0_12 = arith.constant 0 : index
    %c0_13 = arith.constant 0 : index
    %12 = vector.load %arg2[%c6, %c0_12, %c0_13] : memref<8x1x128xf32, #tpu.memory_space<vmem>>, vector<1x1x128xf32>
    %13 = vector.shape_cast %12 : vector<1x1x128xf32> to vector<1x128xf32>
    %c7 = arith.constant 7 : index
    %c0_14 = arith.constant 0 : index
    %c0_15 = arith.constant 0 : index
    %14 = vector.load %arg2[%c7, %c0_14, %c0_15] : memref<8x1x128xf32, #tpu.memory_space<vmem>>, vector<1x1x128xf32>
    %15 = vector.shape_cast %14 : vector<1x1x128xf32> to vector<1x128xf32>
    %c32 = arith.constant 32 : index
    %16 = memref.load %arg1[%c32] : memref<49xf32, #tpu.memory_space<smem>>
    %c0_16 = arith.constant 0 : index
    %17 = memref.load %arg1[%c0_16] : memref<49xf32, #tpu.memory_space<smem>>
    %18 = vector.broadcast %17 : f32 to vector<1x128xf32>
    %19 = arith.mulf %18, %1 : vector<1x128xf32>
    %20 = vector.broadcast %16 : f32 to vector<1x128xf32>
    %21 = arith.addf %20, %19 : vector<1x128xf32>
    %c4_17 = arith.constant 4 : index
    %22 = memref.load %arg1[%c4_17] : memref<49xf32, #tpu.memory_space<smem>>
    %23 = vector.broadcast %22 : f32 to vector<1x128xf32>
    %24 = arith.mulf %23, %3 : vector<1x128xf32>
    %25 = arith.addf %21, %24 : vector<1x128xf32>
    %c8 = arith.constant 8 : index
    %26 = memref.load %arg1[%c8] : memref<49xf32, #tpu.memory_space<smem>>
    %27 = vector.broadcast %26 : f32 to vector<1x128xf32>
    %28 = arith.mulf %27, %5 : vector<1x128xf32>
    %29 = arith.addf %25, %28 : vector<1x128xf32>
    %c12 = arith.constant 12 : index
    %30 = memref.load %arg1[%c12] : memref<49xf32, #tpu.memory_space<smem>>
    %31 = vector.broadcast %30 : f32 to vector<1x128xf32>
    %32 = arith.mulf %31, %7 : vector<1x128xf32>
    %33 = arith.addf %29, %32 : vector<1x128xf32>
    %c16 = arith.constant 16 : index
    %34 = memref.load %arg1[%c16] : memref<49xf32, #tpu.memory_space<smem>>
    %35 = vector.broadcast %34 : f32 to vector<1x128xf32>
    %36 = arith.mulf %35, %9 : vector<1x128xf32>
    %37 = arith.addf %33, %36 : vector<1x128xf32>
    %c20 = arith.constant 20 : index
    %38 = memref.load %arg1[%c20] : memref<49xf32, #tpu.memory_space<smem>>
    %39 = vector.broadcast %38 : f32 to vector<1x128xf32>
    %40 = arith.mulf %39, %11 : vector<1x128xf32>
    %41 = arith.addf %37, %40 : vector<1x128xf32>
    %c24 = arith.constant 24 : index
    %42 = memref.load %arg1[%c24] : memref<49xf32, #tpu.memory_space<smem>>
    %43 = vector.broadcast %42 : f32 to vector<1x128xf32>
    %44 = arith.mulf %43, %13 : vector<1x128xf32>
    %45 = arith.addf %41, %44 : vector<1x128xf32>
    %c28 = arith.constant 28 : index
    %46 = memref.load %arg1[%c28] : memref<49xf32, #tpu.memory_space<smem>>
    %47 = vector.broadcast %46 : f32 to vector<1x128xf32>
    %48 = arith.mulf %47, %15 : vector<1x128xf32>
    %49 = arith.addf %45, %48 : vector<1x128xf32>
    %cst = arith.constant 0.000000e+00 : f32
    %50 = vector.broadcast %cst : f32 to vector<1x128xf32>
    %51 = arith.subf %50, %49 : vector<1x128xf32>
    %52 = math.exp %51 : vector<1x128xf32>
    %cst_18 = arith.constant 1.000000e+00 : f32
    %53 = vector.broadcast %cst_18 : f32 to vector<1x128xf32>
    %54 = arith.addf %53, %52 : vector<1x128xf32>
    %55 = tpu.reciprocal %54 : vector<1x128xf32> -> vector<1x128xf32>
    %c33 = arith.constant 33 : index
    %56 = memref.load %arg1[%c33] : memref<49xf32, #tpu.memory_space<smem>>
    %c1_19 = arith.constant 1 : index
    %57 = memref.load %arg1[%c1_19] : memref<49xf32, #tpu.memory_space<smem>>
    %58 = vector.broadcast %57 : f32 to vector<1x128xf32>
    %59 = arith.mulf %58, %1 : vector<1x128xf32>
    %60 = vector.broadcast %56 : f32 to vector<1x128xf32>
    %61 = arith.addf %60, %59 : vector<1x128xf32>
    %c5_20 = arith.constant 5 : index
    %62 = memref.load %arg1[%c5_20] : memref<49xf32, #tpu.memory_space<smem>>
    %63 = vector.broadcast %62 : f32 to vector<1x128xf32>
    %64 = arith.mulf %63, %3 : vector<1x128xf32>
    %65 = arith.addf %61, %64 : vector<1x128xf32>
    %c9 = arith.constant 9 : index
    %66 = memref.load %arg1[%c9] : memref<49xf32, #tpu.memory_space<smem>>
    %67 = vector.broadcast %66 : f32 to vector<1x128xf32>
    %68 = arith.mulf %67, %5 : vector<1x128xf32>
    %69 = arith.addf %65, %68 : vector<1x128xf32>
    %c13 = arith.constant 13 : index
    %70 = memref.load %arg1[%c13] : memref<49xf32, #tpu.memory_space<smem>>
    %71 = vector.broadcast %70 : f32 to vector<1x128xf32>
    %72 = arith.mulf %71, %7 : vector<1x128xf32>
    %73 = arith.addf %69, %72 : vector<1x128xf32>
    %c17 = arith.constant 17 : index
    %74 = memref.load %arg1[%c17] : memref<49xf32, #tpu.memory_space<smem>>
    %75 = vector.broadcast %74 : f32 to vector<1x128xf32>
    %76 = arith.mulf %75, %9 : vector<1x128xf32>
    %77 = arith.addf %73, %76 : vector<1x128xf32>
    %c21 = arith.constant 21 : index
    %78 = memref.load %arg1[%c21] : memref<49xf32, #tpu.memory_space<smem>>
    %79 = vector.broadcast %78 : f32 to vector<1x128xf32>
    %80 = arith.mulf %79, %11 : vector<1x128xf32>
    %81 = arith.addf %77, %80 : vector<1x128xf32>
    %c25 = arith.constant 25 : index
    %82 = memref.load %arg1[%c25] : memref<49xf32, #tpu.memory_space<smem>>
    %83 = vector.broadcast %82 : f32 to vector<1x128xf32>
    %84 = arith.mulf %83, %13 : vector<1x128xf32>
    %85 = arith.addf %81, %84 : vector<1x128xf32>
    %c29 = arith.constant 29 : index
    %86 = memref.load %arg1[%c29] : memref<49xf32, #tpu.memory_space<smem>>
    %87 = vector.broadcast %86 : f32 to vector<1x128xf32>
    %88 = arith.mulf %87, %15 : vector<1x128xf32>
    %89 = arith.addf %85, %88 : vector<1x128xf32>
    %cst_21 = arith.constant 0.000000e+00 : f32
    %90 = vector.broadcast %cst_21 : f32 to vector<1x128xf32>
    %91 = arith.subf %90, %89 : vector<1x128xf32>
    %92 = math.exp %91 : vector<1x128xf32>
    %cst_22 = arith.constant 1.000000e+00 : f32
    %93 = vector.broadcast %cst_22 : f32 to vector<1x128xf32>
    %94 = arith.addf %93, %92 : vector<1x128xf32>
    %95 = tpu.reciprocal %94 : vector<1x128xf32> -> vector<1x128xf32>
    %c34 = arith.constant 34 : index
    %96 = memref.load %arg1[%c34] : memref<49xf32, #tpu.memory_space<smem>>
    %c2_23 = arith.constant 2 : index
    %97 = memref.load %arg1[%c2_23] : memref<49xf32, #tpu.memory_space<smem>>
    %98 = vector.broadcast %97 : f32 to vector<1x128xf32>
    %99 = arith.mulf %98, %1 : vector<1x128xf32>
    %100 = vector.broadcast %96 : f32 to vector<1x128xf32>
    %101 = arith.addf %100, %99 : vector<1x128xf32>
    %c6_24 = arith.constant 6 : index
    %102 = memref.load %arg1[%c6_24] : memref<49xf32, #tpu.memory_space<smem>>
    %103 = vector.broadcast %102 : f32 to vector<1x128xf32>
    %104 = arith.mulf %103, %3 : vector<1x128xf32>
    %105 = arith.addf %101, %104 : vector<1x128xf32>
    %c10 = arith.constant 10 : index
    %106 = memref.load %arg1[%c10] : memref<49xf32, #tpu.memory_space<smem>>
    %107 = vector.broadcast %106 : f32 to vector<1x128xf32>
    %108 = arith.mulf %107, %5 : vector<1x128xf32>
    %109 = arith.addf %105, %108 : vector<1x128xf32>
    %c14 = arith.constant 14 : index
    %110 = memref.load %arg1[%c14] : memref<49xf32, #tpu.memory_space<smem>>
    %111 = vector.broadcast %110 : f32 to vector<1x128xf32>
    %112 = arith.mulf %111, %7 : vector<1x128xf32>
    %113 = arith.addf %109, %112 : vector<1x128xf32>
    %c18 = arith.constant 18 : index
    %114 = memref.load %arg1[%c18] : memref<49xf32, #tpu.memory_space<smem>>
    %115 = vector.broadcast %114 : f32 to vector<1x128xf32>
    %116 = arith.mulf %115, %9 : vector<1x128xf32>
    %117 = arith.addf %113, %116 : vector<1x128xf32>
    %c22 = arith.constant 22 : index
    %118 = memref.load %arg1[%c22] : memref<49xf32, #tpu.memory_space<smem>>
    %119 = vector.broadcast %118 : f32 to vector<1x128xf32>
    %120 = arith.mulf %119, %11 : vector<1x128xf32>
    %121 = arith.addf %117, %120 : vector<1x128xf32>
    %c26 = arith.constant 26 : index
    %122 = memref.load %arg1[%c26] : memref<49xf32, #tpu.memory_space<smem>>
    %123 = vector.broadcast %122 : f32 to vector<1x128xf32>
    %124 = arith.mulf %123, %13 : vector<1x128xf32>
    %125 = arith.addf %121, %124 : vector<1x128xf32>
    %c30 = arith.constant 30 : index
    %126 = memref.load %arg1[%c30] : memref<49xf32, #tpu.memory_space<smem>>
    %127 = vector.broadcast %126 : f32 to vector<1x128xf32>
    %128 = arith.mulf %127, %15 : vector<1x128xf32>
    %129 = arith.addf %125, %128 : vector<1x128xf32>
    %cst_25 = arith.constant 0.000000e+00 : f32
    %130 = vector.broadcast %cst_25 : f32 to vector<1x128xf32>
    %131 = arith.subf %130, %129 : vector<1x128xf32>
    %132 = math.exp %131 : vector<1x128xf32>
    %cst_26 = arith.constant 1.000000e+00 : f32
    %133 = vector.broadcast %cst_26 : f32 to vector<1x128xf32>
    %134 = arith.addf %133, %132 : vector<1x128xf32>
    %135 = tpu.reciprocal %134 : vector<1x128xf32> -> vector<1x128xf32>
    %c35 = arith.constant 35 : index
    %136 = memref.load %arg1[%c35] : memref<49xf32, #tpu.memory_space<smem>>
    %c3_27 = arith.constant 3 : index
    %137 = memref.load %arg1[%c3_27] : memref<49xf32, #tpu.memory_space<smem>>
    %138 = vector.broadcast %137 : f32 to vector<1x128xf32>
    %139 = arith.mulf %138, %1 : vector<1x128xf32>
    %140 = vector.broadcast %136 : f32 to vector<1x128xf32>
    %141 = arith.addf %140, %139 : vector<1x128xf32>
    %c7_28 = arith.constant 7 : index
    %142 = memref.load %arg1[%c7_28] : memref<49xf32, #tpu.memory_space<smem>>
    %143 = vector.broadcast %142 : f32 to vector<1x128xf32>
    %144 = arith.mulf %143, %3 : vector<1x128xf32>
    %145 = arith.addf %141, %144 : vector<1x128xf32>
    %c11 = arith.constant 11 : index
    %146 = memref.load %arg1[%c11] : memref<49xf32, #tpu.memory_space<smem>>
    %147 = vector.broadcast %146 : f32 to vector<1x128xf32>
    %148 = arith.mulf %147, %5 : vector<1x128xf32>
    %149 = arith.addf %145, %148 : vector<1x128xf32>
    %c15 = arith.constant 15 : index
    %150 = memref.load %arg1[%c15] : memref<49xf32, #tpu.memory_space<smem>>
    %151 = vector.broadcast %150 : f32 to vector<1x128xf32>
    %152 = arith.mulf %151, %7 : vector<1x128xf32>
    %153 = arith.addf %149, %152 : vector<1x128xf32>
    %c19 = arith.constant 19 : index
    %154 = memref.load %arg1[%c19] : memref<49xf32, #tpu.memory_space<smem>>
    %155 = vector.broadcast %154 : f32 to vector<1x128xf32>
    %156 = arith.mulf %155, %9 : vector<1x128xf32>
    %157 = arith.addf %153, %156 : vector<1x128xf32>
    %c23 = arith.constant 23 : index
    %158 = memref.load %arg1[%c23] : memref<49xf32, #tpu.memory_space<smem>>
    %159 = vector.broadcast %158 : f32 to vector<1x128xf32>
    %160 = arith.mulf %159, %11 : vector<1x128xf32>
    %161 = arith.addf %157, %160 : vector<1x128xf32>
    %c27 = arith.constant 27 : index
    %162 = memref.load %arg1[%c27] : memref<49xf32, #tpu.memory_space<smem>>
    %163 = vector.broadcast %162 : f32 to vector<1x128xf32>
    %164 = arith.mulf %163, %13 : vector<1x128xf32>
    %165 = arith.addf %161, %164 : vector<1x128xf32>
    %c31 = arith.constant 31 : index
    %166 = memref.load %arg1[%c31] : memref<49xf32, #tpu.memory_space<smem>>
    %167 = vector.broadcast %166 : f32 to vector<1x128xf32>
    %168 = arith.mulf %167, %15 : vector<1x128xf32>
    %169 = arith.addf %165, %168 : vector<1x128xf32>
    %cst_29 = arith.constant 0.000000e+00 : f32
    %170 = vector.broadcast %cst_29 : f32 to vector<1x128xf32>
    %171 = arith.subf %170, %169 : vector<1x128xf32>
    %172 = math.exp %171 : vector<1x128xf32>
    %cst_30 = arith.constant 1.000000e+00 : f32
    %173 = vector.broadcast %cst_30 : f32 to vector<1x128xf32>
    %174 = arith.addf %173, %172 : vector<1x128xf32>
    %175 = tpu.reciprocal %174 : vector<1x128xf32> -> vector<1x128xf32>
    %c44 = arith.constant 44 : index
    %176 = memref.load %arg1[%c44] : memref<49xf32, #tpu.memory_space<smem>>
    %c36 = arith.constant 36 : index
    %177 = memref.load %arg1[%c36] : memref<49xf32, #tpu.memory_space<smem>>
    %178 = vector.broadcast %177 : f32 to vector<1x128xf32>
    %179 = arith.mulf %178, %55 : vector<1x128xf32>
    %180 = vector.broadcast %176 : f32 to vector<1x128xf32>
    %181 = arith.addf %180, %179 : vector<1x128xf32>
    %c38 = arith.constant 38 : index
    %182 = memref.load %arg1[%c38] : memref<49xf32, #tpu.memory_space<smem>>
    %183 = vector.broadcast %182 : f32 to vector<1x128xf32>
    %184 = arith.mulf %183, %95 : vector<1x128xf32>
    %185 = arith.addf %181, %184 : vector<1x128xf32>
    %c40 = arith.constant 40 : index
    %186 = memref.load %arg1[%c40] : memref<49xf32, #tpu.memory_space<smem>>
    %187 = vector.broadcast %186 : f32 to vector<1x128xf32>
    %188 = arith.mulf %187, %135 : vector<1x128xf32>
    %189 = arith.addf %185, %188 : vector<1x128xf32>
    %c42 = arith.constant 42 : index
    %190 = memref.load %arg1[%c42] : memref<49xf32, #tpu.memory_space<smem>>
    %191 = vector.broadcast %190 : f32 to vector<1x128xf32>
    %192 = arith.mulf %191, %175 : vector<1x128xf32>
    %193 = arith.addf %189, %192 : vector<1x128xf32>
    %cst_31 = arith.constant 0.000000e+00 : f32
    %194 = vector.broadcast %cst_31 : f32 to vector<1x128xf32>
    %195 = arith.subf %194, %193 : vector<1x128xf32>
    %196 = math.exp %195 : vector<1x128xf32>
    %cst_32 = arith.constant 1.000000e+00 : f32
    %197 = vector.broadcast %cst_32 : f32 to vector<1x128xf32>
    %198 = arith.addf %197, %196 : vector<1x128xf32>
    %199 = tpu.reciprocal %198 : vector<1x128xf32> -> vector<1x128xf32>
    %c45 = arith.constant 45 : index
    %200 = memref.load %arg1[%c45] : memref<49xf32, #tpu.memory_space<smem>>
    %c37 = arith.constant 37 : index
    %201 = memref.load %arg1[%c37] : memref<49xf32, #tpu.memory_space<smem>>
    %202 = vector.broadcast %201 : f32 to vector<1x128xf32>
    %203 = arith.mulf %202, %55 : vector<1x128xf32>
    %204 = vector.broadcast %200 : f32 to vector<1x128xf32>
    %205 = arith.addf %204, %203 : vector<1x128xf32>
    %c39 = arith.constant 39 : index
    %206 = memref.load %arg1[%c39] : memref<49xf32, #tpu.memory_space<smem>>
    %207 = vector.broadcast %206 : f32 to vector<1x128xf32>
    %208 = arith.mulf %207, %95 : vector<1x128xf32>
    %209 = arith.addf %205, %208 : vector<1x128xf32>
    %c41 = arith.constant 41 : index
    %210 = memref.load %arg1[%c41] : memref<49xf32, #tpu.memory_space<smem>>
    %211 = vector.broadcast %210 : f32 to vector<1x128xf32>
    %212 = arith.mulf %211, %135 : vector<1x128xf32>
    %213 = arith.addf %209, %212 : vector<1x128xf32>
    %c43 = arith.constant 43 : index
    %214 = memref.load %arg1[%c43] : memref<49xf32, #tpu.memory_space<smem>>
    %215 = vector.broadcast %214 : f32 to vector<1x128xf32>
    %216 = arith.mulf %215, %175 : vector<1x128xf32>
    %217 = arith.addf %213, %216 : vector<1x128xf32>
    %cst_33 = arith.constant 0.000000e+00 : f32
    %218 = vector.broadcast %cst_33 : f32 to vector<1x128xf32>
    %219 = arith.subf %218, %217 : vector<1x128xf32>
    %220 = math.exp %219 : vector<1x128xf32>
    %cst_34 = arith.constant 1.000000e+00 : f32
    %221 = vector.broadcast %cst_34 : f32 to vector<1x128xf32>
    %222 = arith.addf %221, %220 : vector<1x128xf32>
    %223 = tpu.reciprocal %222 : vector<1x128xf32> -> vector<1x128xf32>
    %c48 = arith.constant 48 : index
    %224 = memref.load %arg1[%c48] : memref<49xf32, #tpu.memory_space<smem>>
    %c46 = arith.constant 46 : index
    %225 = memref.load %arg1[%c46] : memref<49xf32, #tpu.memory_space<smem>>
    %226 = vector.broadcast %225 : f32 to vector<1x128xf32>
    %227 = arith.mulf %226, %199 : vector<1x128xf32>
    %228 = vector.broadcast %224 : f32 to vector<1x128xf32>
    %229 = arith.addf %228, %227 : vector<1x128xf32>
    %c47 = arith.constant 47 : index
    %230 = memref.load %arg1[%c47] : memref<49xf32, #tpu.memory_space<smem>>
    %231 = vector.broadcast %230 : f32 to vector<1x128xf32>
    %232 = arith.mulf %231, %223 : vector<1x128xf32>
    %233 = arith.addf %229, %232 : vector<1x128xf32>
    %c0_35 = arith.constant 0 : index
    %c0_36 = arith.constant 0 : index
    %234 = vector.load %arg3[%c0_35, %c0_36] : memref<1x128xf32, #tpu.memory_space<vmem>>, vector<1x128xf32>
    tpu.vector_store %arg3[%c0_35, %c0_36], %233 {strides = array<i32>} : memref<1x128xf32, #tpu.memory_space<vmem>>, vector<1x128xf32>,
    return
  }
  func.func @transform_0(%arg0: i32) -> i32 {
    %c0_i32 = arith.constant 0 : i32
    %c0_i32_0 = arith.constant 0 : i32
    return %c0_i32 : i32
  }
  func.func @transform_1(%arg0: i32) -> (i32, i32, i32) {
    %c0_i32 = arith.constant 0 : i32
    %c0_i32_0 = arith.constant 0 : i32
    %c0_i32_1 = arith.constant 0 : i32
    return %c0_i32, %arg0, %c0_i32_0 : i32, i32, i32
  }
  func.func @transform_2(%arg0: i32) -> (i32, i32) {
    %c0_i32 = arith.constant 0 : i32
    %c0_i32_0 = arith.constant 0 : i32
    return %arg0, %c0_i32 : i32, i32
  }
}

</mosaic_0001>

<llo_original>
// kernel: tpu_custom_call.1
$region0: #{tpu_custom_call.1}
  #allocation0 [shape = 'u32[]', space=smem, size = 0x4, offset = 0x4, fixed_abs, tag = 'smem constant byte address 0x4 - core index']
  #allocation1 [shape = 'u32[144,128]{1,0:T(1,128)}', space=vmem, size = 0x12000, scoped, tag = 'internal scratch']
  %s0 = inlined_call_operand.hbm [shape: f32[49], index: 0, kind: input, shape index: {}]
  %s1 = inlined_call_operand.hbm [shape: f32[8,1,128], index: 1, kind: input, shape index: {}]
  %s2 = inlined_call_operand.hbm [shape: f32[1,128], index: 2, kind: output, shape index: {}]
  %s3 = sld [smem:[#allocation0]]
  $region26: #{tpu_custom_call.1} parent=0
    _
  %s5 = ssub.s32 1, %s3
  %s6 = scalar_select 0, %s5, %s3
  $region1: #{tpu_custom_call.1} parent=0
    #allocation2 [shape = 'u8[512]{0}', space=smem, size = 0x200, scoped, tag = 'input window, operand 0, single buffered']
    #allocation3 [shape = 's32[1]{0}', space=sflag, size = 0x4, scoped, tag = 'scoped memory for tpu_custom_call.1']
    #allocation4 [shape = 's32[1]{0}', space=sflag, size = 0x4, scoped, tag = 'scoped memory for tpu_custom_call.1']
    #allocation5 [shape = 's32[1]{0}', space=sflag, size = 0x4, scoped, tag = 'scoped memory for tpu_custom_call.1']
    #allocation6 [shape = 'u8[4096]{0}', space=vmem, size = 0x1000, scoped, tag = 'input window, operand 1, single buffered']
    #allocation7 [shape = 'u8[512]{0}', space=vmem, size = 0x400, scoped, tag = 'output window, operand 0, single buffered']
    %7 = vsyncpa [#allocation5], 0
    %8 = vsyncpa [#allocation3], 0
    %9 = vsyncpa [#allocation4], 0
    // Predicated region
    $region2: #{tpu_custom_call.1} parent=1 // pred_check
      _
    $region3: #{tpu_custom_call.1} parent=1 // pred_check_branch
      %11 = sbr.rel (0) target = $region5
    $region4: #{tpu_custom_call.1} parent=1 // pred_region
      %s13 = ssub.s32 16, 16
      %14 = vsyncadd [#allocation5], %s13
      %17 = dma.hbm_to_smem %s0, 16, [#allocation2], [#allocation5]
    $region5: #{tpu_custom_call.1} parent=1 // pred_fallthru
      _
    // Predicated region
    $region6: #{tpu_custom_call.1} parent=1 // pred_check
      _
    $region7: #{tpu_custom_call.1} parent=1 // pred_check_branch
      %19 = sbr.rel (0) target = $region9
    $region8: #{tpu_custom_call.1} parent=1 // pred_region
      %s21 = ssub.s32 128, 128
      %22 = vsyncadd [#allocation3], %s21
      %s23 = sshll.u32 [#allocation6], 4
      %s24 = int_to_ptr.vmem [resolvable:$true] %s23
      %29 = dma.hbm_to_vmem [thread:$0]  %s1, 128, %s24, [#allocation3], 16, 16, 1
    $region9: #{tpu_custom_call.1} parent=1 // pred_fallthru
      _
    // Predicated region
    $region10: #{tpu_custom_call.1} parent=1 // pred_check
      _
    $region11: #{tpu_custom_call.1} parent=1 // pred_check_branch
      %31 = sbr.rel (0) target = $region13
    $region12: #{tpu_custom_call.1} parent=1 // pred_region
      %32 = dma.done [#allocation5], 16
    $region13: #{tpu_custom_call.1} parent=1 // pred_fallthru
      _
    // Predicated region
    $region14: #{tpu_custom_call.1} parent=1 // pred_check
      _
    $region15: #{tpu_custom_call.1} parent=1 // pred_check_branch
      %34 = sbr.rel (0) target = $region17
    $region16: #{tpu_custom_call.1} parent=1 // pred_region
      %35 = dma.done [#allocation3], 128
    $region17: #{tpu_custom_call.1} parent=1 // pred_fallthru
      _
    %36 = sfence
    %v37 = vld [vmem:[#allocation6] sm:$0x1]
    %s38 = scalar_lea.vmem [#allocation6], 1
    %v39 = vld [vmem:[%s38] sm:$0x1]
    %s40 = scalar_lea.vmem [#allocation6], 2
    %v41 = vld [vmem:[%s40] sm:$0x1]
    %s42 = scalar_lea.vmem [#allocation6], 3
    %v43 = vld [vmem:[%s42] sm:$0x1]
    %s44 = scalar_lea.vmem [#allocation6], 4
    %v45 = vld [vmem:[%s44] sm:$0x1]
    %s46 = scalar_lea.vmem [#allocation6], 5
    %v47 = vld [vmem:[%s46] sm:$0x1]
    %s48 = scalar_lea.vmem [#allocation6], 6
    %v49 = vld [vmem:[%s48] sm:$0x1]
    %s50 = scalar_lea.vmem [#allocation6], 7
    %v51 = vld [vmem:[%s50] sm:$0x1]
    %s52 = sld [smem:[#allocation2 + $0x20]]
    %s53 = sld [smem:[#allocation2]]
    %v54 = vstv %s53
    %v55 = vmul.f32 %v54, %v37
    %v56 = vstv %s52
    %v57 = vadd.f32 %v56, %v55
    %s58 = sld [smem:[#allocation2 + $0x4]]
    %v59 = vstv %s58
    %v60 = vmul.f32 %v59, %v39
    %v61 = vadd.f32 %v57, %v60
    %s62 = sld [smem:[#allocation2 + $0x8]]
    %v63 = vstv %s62
    %v64 = vmul.f32 %v63, %v41
    %v65 = vadd.f32 %v61, %v64
    %s66 = sld [smem:[#allocation2 + $0xc]]
    %v67 = vstv %s66
    %v68 = vmul.f32 %v67, %v43
    %v69 = vadd.f32 %v65, %v68
    %s70 = sld [smem:[#allocation2 + $0x10]]
    %v71 = vstv %s70
    %v72 = vmul.f32 %v71, %v45
    %v73 = vadd.f32 %v69, %v72
    %s74 = sld [smem:[#allocation2 + $0x14]]
    %v75 = vstv %s74
    %v76 = vmul.f32 %v75, %v47
    %v77 = vadd.f32 %v73, %v76
    %s78 = sld [smem:[#allocation2 + $0x18]]
    %v79 = vstv %s78
    %v80 = vmul.f32 %v79, %v49
    %v81 = vadd.f32 %v77, %v80
    %s82 = sld [smem:[#allocation2 + $0x1c]]
    %v83 = vstv %s82
    %v84 = vmul.f32 %v83, %v51
    %v85 = vadd.f32 %v81, %v84
    %v86 = vsub.f32 0.0, %v85
    %v87 = vmul.f32 %v86, 1.442695
    %v88 = vpow.pop %v87
    %v89 = vadd.f32 %v88, 1.0
    %v90 = vrcp.pop %v89
    %s91 = sld [smem:[#allocation2 + $0x21]]
    %s92 = sld [smem:[#allocation2 + $0x1]]
    %v93 = vstv %s92
    %v94 = vmul.f32 %v93, %v37
    %v95 = vstv %s91
    %v96 = vadd.f32 %v95, %v94
    %s97 = sld [smem:[#allocation2 + $0x5]]
    %v98 = vstv %s97
    %v99 = vmul.f32 %v98, %v39
    %v100 = vadd.f32 %v96, %v99
    %s101 = sld [smem:[#allocation2 + $0x9]]
    %v102 = vstv %s101
    %v103 = vmul.f32 %v102, %v41
    %v104 = vadd.f32 %v100, %v103
    %s105 = sld [smem:[#allocation2 + $0xd]]
    %v106 = vstv %s105
    %v107 = vmul.f32 %v106, %v43
    %v108 = vadd.f32 %v104, %v107
    %s109 = sld [smem:[#allocation2 + $0x11]]
    %v110 = vstv %s109
    %v111 = vmul.f32 %v110, %v45
    %v112 = vadd.f32 %v108, %v111
    %s113 = sld [smem:[#allocation2 + $0x15]]
    %v114 = vstv %s113
    %v115 = vmul.f32 %v114, %v47
    %v116 = vadd.f32 %v112, %v115
    %s117 = sld [smem:[#allocation2 + $0x19]]
    %v118 = vstv %s117
    %v119 = vmul.f32 %v118, %v49
    %v120 = vadd.f32 %v116, %v119
    %s121 = sld [smem:[#allocation2 + $0x1d]]
    %v122 = vstv %s121
    %v123 = vmul.f32 %v122, %v51
    %v124 = vadd.f32 %v120, %v123
    %v125 = vsub.f32 0.0, %v124
    %v126 = vmul.f32 %v125, 1.442695
    %v127 = vpow.pop %v126
    %v128 = vadd.f32 %v127, 1.0
    %v129 = vrcp.pop %v128
    %s130 = sld [smem:[#allocation2 + $0x22]]
    %s131 = sld [smem:[#allocation2 + $0x2]]
    %v132 = vstv %s131
    %v133 = vmul.f32 %v132, %v37
    %v134 = vstv %s130
    %v135 = vadd.f32 %v134, %v133
    %s136 = sld [smem:[#allocation2 + $0x6]]
    %v137 = vstv %s136
    %v138 = vmul.f32 %v137, %v39
    %v139 = vadd.f32 %v135, %v138
    %s140 = sld [smem:[#allocation2 + $0xa]]
    %v141 = vstv %s140
    %v142 = vmul.f32 %v141, %v41
    %v143 = vadd.f32 %v139, %v142
    %s144 = sld [smem:[#allocation2 + $0xe]]
    %v145 = vstv %s144
    %v146 = vmul.f32 %v145, %v43
    %v147 = vadd.f32 %v143, %v146
    %s148 = sld [smem:[#allocation2 + $0x12]]
    %v149 = vstv %s148
    %v150 = vmul.f32 %v149, %v45
    %v151 = vadd.f32 %v147, %v150
    %s152 = sld [smem:[#allocation2 + $0x16]]
    %v153 = vstv %s152
    %v154 = vmul.f32 %v153, %v47
    %v155 = vadd.f32 %v151, %v154
    %s156 = sld [smem:[#allocation2 + $0x1a]]
    %v157 = vstv %s156
    %v158 = vmul.f32 %v157, %v49
    %v159 = vadd.f32 %v155, %v158
    %s160 = sld [smem:[#allocation2 + $0x1e]]
    %v161 = vstv %s160
    %v162 = vmul.f32 %v161, %v51
    %v163 = vadd.f32 %v159, %v162
    %v164 = vsub.f32 0.0, %v163
    %v165 = vmul.f32 %v164, 1.442695
    %v166 = vpow.pop %v165
    %v167 = vadd.f32 %v166, 1.0
    %v168 = vrcp.pop %v167
    %s169 = sld [smem:[#allocation2 + $0x23]]
    %s170 = sld [smem:[#allocation2 + $0x3]]
    %v171 = vstv %s170
    %v172 = vmul.f32 %v171, %v37
    %v173 = vstv %s169
    %v174 = vadd.f32 %v173, %v172
    %s175 = sld [smem:[#allocation2 + $0x7]]
    %v176 = vstv %s175
    %v177 = vmul.f32 %v176, %v39
    %v178 = vadd.f32 %v174, %v177
    %s179 = sld [smem:[#allocation2 + $0xb]]
    %v180 = vstv %s179
    %v181 = vmul.f32 %v180, %v41
    %v182 = vadd.f32 %v178, %v181
    %s183 = sld [smem:[#allocation2 + $0xf]]
    %v184 = vstv %s183
    %v185 = vmul.f32 %v184, %v43
    %v186 = vadd.f32 %v182, %v185
    %s187 = sld [smem:[#allocation2 + $0x13]]
    %v188 = vstv %s187
    %v189 = vmul.f32 %v188, %v45
    %v190 = vadd.f32 %v186, %v189
    %s191 = sld [smem:[#allocation2 + $0x17]]
    %v192 = vstv %s191
    %v193 = vmul.f32 %v192, %v47
    %v194 = vadd.f32 %v190, %v193
    %s195 = sld [smem:[#allocation2 + $0x1b]]
    %v196 = vstv %s195
    %v197 = vmul.f32 %v196, %v49
    %v198 = vadd.f32 %v194, %v197
    %s199 = sld [smem:[#allocation2 + $0x1f]]
    %v200 = vstv %s199
    %v201 = vmul.f32 %v200, %v51
    %v202 = vadd.f32 %v198, %v201
    %v203 = vsub.f32 0.0, %v202
    %v204 = vmul.f32 %v203, 1.442695
    %v205 = vpow.pop %v204
    %v206 = vadd.f32 %v205, 1.0
    %v207 = vrcp.pop %v206
    %s208 = sld [smem:[#allocation2 + $0x2c]]
    %s209 = sld [smem:[#allocation2 + $0x24]]
    %v210 = vstv %s209
    %v211 = vmul.f32 %v210, %v90
    %v212 = vstv %s208
    %v213 = vadd.f32 %v212, %v211
    %s214 = sld [smem:[#allocation2 + $0x26]]
    %v215 = vstv %s214
    %v216 = vmul.f32 %v215, %v129
    %v217 = vadd.f32 %v213, %v216
    %s218 = sld [smem:[#allocation2 + $0x28]]
    %v219 = vstv %s218
    %v220 = vmul.f32 %v219, %v168
    %v221 = vadd.f32 %v217, %v220
    %s222 = sld [smem:[#allocation2 + $0x2a]]
    %v223 = vstv %s222
    %v224 = vmul.f32 %v223, %v207
    %v225 = vadd.f32 %v221, %v224
    %v226 = vsub.f32 0.0, %v225
    %v227 = vmul.f32 %v226, 1.442695
    %v228 = vpow.pop %v227
    %v229 = vadd.f32 %v228, 1.0
    %v230 = vrcp.pop %v229
    %s231 = sld [smem:[#allocation2 + $0x2d]]
    %s232 = sld [smem:[#allocation2 + $0x25]]
    %v233 = vstv %s232
    %v234 = vmul.f32 %v233, %v90
    %v235 = vstv %s231
    %v236 = vadd.f32 %v235, %v234
    %s237 = sld [smem:[#allocation2 + $0x27]]
    %v238 = vstv %s237
    %v239 = vmul.f32 %v238, %v129
    %v240 = vadd.f32 %v236, %v239
    %s241 = sld [smem:[#allocation2 + $0x29]]
    %v242 = vstv %s241
    %v243 = vmul.f32 %v242, %v168
    %v244 = vadd.f32 %v240, %v243
    %s245 = sld [smem:[#allocation2 + $0x2b]]
    %v246 = vstv %s245
    %v247 = vmul.f32 %v246, %v207
    %v248 = vadd.f32 %v244, %v247
    %v249 = vsub.f32 0.0, %v248
    %v250 = vmul.f32 %v249, 1.442695
    %v251 = vpow.pop %v250
    %v252 = vadd.f32 %v251, 1.0
    %v253 = vrcp.pop %v252
    %s254 = sld [smem:[#allocation2 + $0x30]]
    %s255 = sld [smem:[#allocation2 + $0x2e]]
    %v256 = vstv %s255
    %v257 = vmul.f32 %v256, %v230
    %v258 = vstv %s254
    %v259 = vadd.f32 %v258, %v257
    %s260 = sld [smem:[#allocation2 + $0x2f]]
    %v261 = vstv %s260
    %v262 = vmul.f32 %v261, %v253
    %v263 = vadd.f32 %v259, %v262
    %264 = vst [vmem:[#allocation7] sm:$0x1] %v263
    // Predicated region
    $region18: #{tpu_custom_call.1} parent=1 // pred_check
      _
    $region19: #{tpu_custom_call.1} parent=1 // pred_check_branch
      %266 = sbr.rel (0) target = $region21
    $region20: #{tpu_custom_call.1} parent=1 // pred_region
      %s268 = ssub.s32 16, 16
      %269 = vsyncadd [#allocation4], %s268
      %s271 = sshll.u32 [#allocation7], 4
      %s272 = int_to_ptr.vmem [resolvable:$true] %s271
      %274 = dma.vmem_to_hbm [thread:$0]  %s272, 16, %s2, [#allocation4]
    $region21: #{tpu_custom_call.1} parent=1 // pred_fallthru
      _
    // Predicated region
    $region22: #{tpu_custom_call.1} parent=1 // pred_check
      _
    $region23: #{tpu_custom_call.1} parent=1 // pred_check_branch
      %276 = sbr.rel (0) target = $region25
    $region24: #{tpu_custom_call.1} parent=1 // pred_region
      %277 = dma.done [#allocation4], 16
    $region25: #{tpu_custom_call.1} parent=1 // pred_fallthru
      _
    %278 = vsyncpa [#allocation3], 1
    %279 = vsyncpa [#allocation4], 1
    %280 = vsyncpa [#allocation5], 1

</llo_original>
